<compile_context>
chip_gen: v7x
topology: tpu7x:2x2x1
jax: 0.10.0
libtpu: 0.0.40
codegen_flags: <defaults>
</compile_context>

<pallas_src>
import jax
import jax.numpy as jnp
from jax.experimental import pallas as pl
from jax.experimental.pallas import tpu as pltpu

INPUT_DIMS = 32
N_ACTIONS = 8
HIDDEN = 128
MAX_DEPTH = 3
N_INTERNAL = 2 ** MAX_DEPTH - 1   # 7 internal nodes (depths 0..2), heap order
N_LEAVES = 2 ** MAX_DEPTH         # 8 leaves (depth 3), index = path bits (right=1)

_WCAT_COLS = 2 * HIDDEN           # 256: [w1 | alpha*ddt_w^T | zero pad]
_HIGH = jax.lax.Precision.HIGHEST


def _actor_critic_kernel(x_ref, wcat_ref, small_ref, out_ref):
    x = x_ref[...]                                                     # (1, I) f32

    # One MXU pass: critic hidden pre-activation (lanes 0..127) + gate logits
    # (lanes 128..134, alpha already folded into the weights).
    hcat = jnp.dot(x, wcat_ref[...],
                   preferred_element_type=jnp.float32,
                   precision=_HIGH)                                    # (1, 256)

    b1 = small_ref[8:9, :]                                             # (1, 128)
    w2_row = small_ref[9:10, :]                                        # (1, 128)
    gate_bias = small_ref[10:11, :]                                    # (1, 128), lanes 0..6 valid
    b2 = small_ref[11:12, 0:1]                                         # (1, 1)

    # ---------------- critic: ReLU + VPU dot with w2 ----------------
    h = jnp.maximum(hcat[:, :HIDDEN] + b1, 0.0)                        # (1, 128)
    v = jnp.sum(h * w2_row, axis=1, keepdims=True) + b2                # (1, 1)

    # ---------------- actor: hard-routed soft decision tree ----------------
    gates = jax.nn.sigmoid(hcat[:, HIDDEN:] + gate_bias)               # (1, 128), lanes 0..6 valid

    def g(i):                                                          # (1, 1) gate of heap node i
        return gates[:, i:i + 1]

    half = jnp.float32(0.5)

    v0 = g(0)
    r0 = v0 >= half
    f0 = jnp.where(r0, v0, 1.0 - v0)

    v1 = jnp.where(r0, g(2), g(1))
    r1 = v1 >= half
    f1 = jnp.where(r1, v1, 1.0 - v1)

    v2 = jnp.where(r0, jnp.where(r1, g(6), g(5)),
                       jnp.where(r1, g(4), g(3)))
    r2 = v2 >= half
    f2 = jnp.where(r2, v2, 1.0 - v2)

    leaf_idx = (r0.astype(jnp.int32) * 4
                + r1.astype(jnp.int32) * 2
                + r2.astype(jnp.int32))                                # (1, 1)

    # one-hot leaf selection inside a single (8,128) vreg (no dynamic gather)
    leaf_block = small_ref[0:N_LEAVES, :]                              # (8, 128)
    row_ids = jax.lax.broadcasted_iota(jnp.int32, leaf_block.shape, 0)
    leaf_row = jnp.sum(jnp.where(row_ids == leaf_idx, leaf_block, 0.0),
                       axis=0, keepdims=True)                          # (1, 128), lanes >= A are 0

    p_row = (f0 * f1 * f2) * leaf_row                                  # (1, 128)

    # lane-dense combined output: p in lanes 0..A-1, v in lane A
    lane_ids = jax.lax.broadcasted_iota(jnp.int32, p_row.shape, 1)
    out_ref[...] = jnp.where(lane_ids == N_ACTIONS, v, p_row)


def pack_params(params):
    """One-time host-side packing of the 9 raw parameters into 2 slabs."""
    I = params["w1"].shape[0]
    A = params["leaf"].shape[1]

    # f32 weight slab: (I, 256) = [w1 | (alpha*ddt_w)^T | 0]
    wcat = jnp.zeros((I, _WCAT_COLS), jnp.float32)
    wcat = wcat.at[:, :HIDDEN].set(params["w1"])
    wcat = wcat.at[:, HIDDEN:HIDDEN + N_INTERNAL].set(
        (params["ddt_alpha"] * params["ddt_w"]).T)

    # small-parameter slab: (16, 128) f32
    small = jnp.zeros((16, 128), jnp.float32)
    small = small.at[0:N_LEAVES, 0:A].set(params["leaf"])              # rows 0..7: leaves
    small = small.at[8, :].set(params["b1"][0])                        # row 8: b1
    small = small.at[9, :].set(params["w2"][:, 0])                     # row 9: w2^T
    small = small.at[10, 0:N_INTERNAL].set(                            # row 10: alpha*bias
        params["ddt_alpha"][:, 0] * params["ddt_bias"][:, 0])
    small = small.at[11, 0].set(params["b2"][0, 0])                    # row 11 lane 0: b2
    return wcat, small


def actor_critic_forward(x, wcat, small, n_actions=N_ACTIONS):
    vmem_spec = pl.BlockSpec(memory_space=pltpu.MemorySpace.VMEM)
    out = pl.pallas_call(
        _actor_critic_kernel,
        out_shape=jax.ShapeDtypeStruct((1, 128), jnp.float32),
        in_specs=[vmem_spec, vmem_spec, vmem_spec],
        out_specs=vmem_spec,
    )(x, wcat, small)
    # PyTorch: actor output broadcasts (1,)*(A,) -> (A,); critic output is (1, 1)
    p = out[0, :n_actions]
    v = out[0:1, n_actions:n_actions + 1]
    return p, v


def ref_forward(x, params):
    """Pure-JAX reference of ActorCritic.forward (batch=1)."""
    logits = jnp.sum(params["ddt_w"] * x, axis=1)                               # (7,)
    gates = jax.nn.sigmoid(params["ddt_alpha"][:, 0] * (logits + params["ddt_bias"][:, 0]))
    v0 = gates[0]; r0 = v0 >= 0.5; f0 = jnp.where(r0, v0, 1.0 - v0)
    v1 = jnp.where(r0, gates[2], gates[1]); r1 = v1 >= 0.5; f1 = jnp.where(r1, v1, 1.0 - v1)
    v2 = jnp.where(r0, jnp.where(r1, gates[6], gates[5]),
                       jnp.where(r1, gates[4], gates[3]))
    r2 = v2 >= 0.5; f2 = jnp.where(r2, v2, 1.0 - v2)
    leaf_idx = r0.astype(jnp.int32) * 4 + r1.astype(jnp.int32) * 2 + r2.astype(jnp.int32)
    p = f0 * f1 * f2 * params["leaf"][leaf_idx]                                 # (A,)
    h = jnp.maximum(jnp.dot(x, params["w1"], precision=_HIGH) + params["b1"], 0.0)
    v = jnp.dot(h, params["w2"], precision=_HIGH) + params["b2"]
    return p, v


if __name__ == "__main__":
    I, A = INPUT_DIMS, N_ACTIONS
    key = jax.random.PRNGKey(0)
    ks = jax.random.split(key, 9)

    # Deterministic synthetic init. NOTE: PyTorch inits bias/alpha/prob_dist to
    # zeros (which would make the actor output identically zero); we use small
    # deterministic random values so the kernel path is exercised non-trivially.
    params = {
        "ddt_w":     0.1 * jax.random.normal(ks[0], (N_INTERNAL, I), jnp.float32),
        "ddt_bias":  0.05 * jax.random.normal(ks[1], (N_INTERNAL, 1), jnp.float32),
        "ddt_alpha": 1.0 + 0.1 * jax.random.normal(ks[2], (N_INTERNAL, 1), jnp.float32),
        "leaf":      0.1 * jax.random.normal(ks[3], (N_LEAVES, A), jnp.float32),
        "w1": jax.random.normal(ks[4], (I, HIDDEN), jnp.float32) / jnp.sqrt(I),
        "b1": 0.01 * jax.random.normal(ks[5], (1, HIDDEN), jnp.float32),
        "w2": jax.random.normal(ks[6], (HIDDEN, 1), jnp.float32) / jnp.sqrt(HIDDEN),
        "b2": jnp.zeros((1, 1), jnp.float32),
    }
    x = jax.random.normal(ks[7], (1, I), jnp.float32)

    # One-time parameter packing (outside the per-step path).
    wcat, small = pack_params(params)

    p, v = actor_critic_forward(x, wcat, small)
    jax.block_until_ready((p, v))

    p_ref, v_ref = ref_forward(x, params)
    assert p.shape == (A,), p.shape
    assert v.shape == (1, 1), v.shape
    assert jnp.allclose(p, p_ref, rtol=1e-4, atol=1e-5), (p, p_ref)
    assert jnp.allclose(v, v_ref, rtol=1e-4, atol=1e-4), (v, v_ref)
    print("KERNEL_OK")
</pallas_src>

<mosaic_0001>
module attributes {stable_mosaic.version = 11 : i64} {
  func.func @_actor_critic_kernel(%arg0: memref<1x32xf32, #tpu.memory_space<vmem>>, %arg1: memref<32x256xf32, #tpu.memory_space<vmem>>, %arg2: memref<16x128xf32, #tpu.memory_space<vmem>>, %arg3: memref<1x128xf32, #tpu.memory_space<vmem>>) attributes {dimension_semantics = [], scalar_prefetch = 0 : i64, scratch_operands = 0 : i64, tpu.core_type = #tpu.core_type<tc>} {
    %c0 = arith.constant 0 : index
    %c0_0 = arith.constant 0 : index
    %0 = vector.load %arg0[%c0, %c0_0] : memref<1x32xf32, #tpu.memory_space<vmem>>, vector<1x32xf32>
    %c0_1 = arith.constant 0 : index
    %c0_2 = arith.constant 0 : index
    %1 = vector.load %arg1[%c0_1, %c0_2] : memref<32x256xf32, #tpu.memory_space<vmem>>, vector<32x256xf32>
    %cst = arith.constant dense<0.000000e+00> : vector<1x256xf32>
    %2 = tpu.matmul %0, %1, %cst {dimension_numbers = #tpu.dot_dimension_numbers<[1], [0], [0], [1], [0, 0, 1, 1], [], []>, precision = #tpu.contract_precision<fp32>} : vector<1x32xf32>, vector<32x256xf32>, vector<1x256xf32> -> vector<1x256xf32>
    %c8 = arith.constant 8 : index
    %c0_3 = arith.constant 0 : index
    %3 = vector.load %arg2[%c8, %c0_3] : memref<16x128xf32, #tpu.memory_space<vmem>>, vector<1x128xf32>
    %c9 = arith.constant 9 : index
    %c0_4 = arith.constant 0 : index
    %4 = vector.load %arg2[%c9, %c0_4] : memref<16x128xf32, #tpu.memory_space<vmem>>, vector<1x128xf32>
    %c10 = arith.constant 10 : index
    %c0_5 = arith.constant 0 : index
    %5 = vector.load %arg2[%c10, %c0_5] : memref<16x128xf32, #tpu.memory_space<vmem>>, vector<1x128xf32>
    %c11 = arith.constant 11 : index
    %c0_6 = arith.constant 0 : index
    %6 = vector.load %arg2[%c11, %c0_6] : memref<16x128xf32, #tpu.memory_space<vmem>>, vector<1x1xf32>
    %7 = vector.extract_strided_slice %2 {offsets = [0, 0], sizes = [1, 128], strides = [1, 1]} : vector<1x256xf32> to vector<1x128xf32>
    %8 = arith.addf %7, %3 : vector<1x128xf32>
    %cst_7 = arith.constant 0.000000e+00 : f32
    %9 = vector.broadcast %cst_7 : f32 to vector<1x128xf32>
    %10 = arith.maximumf %8, %9 : vector<1x128xf32>
    %11 = arith.mulf %10, %4 : vector<1x128xf32>
    %cst_8 = arith.constant dense<0.000000e+00> : vector<1xf32>
    %12 = vector.multi_reduction <add>, %11, %cst_8 [1] : vector<1x128xf32> to vector<1xf32>
    %13 = vector.shape_cast %12 : vector<1xf32> to vector<1x1xf32>
    %14 = arith.addf %13, %6 : vector<1x1xf32>
    %15 = vector.extract_strided_slice %2 {offsets = [0, 128], sizes = [1, 128], strides = [1, 1]} : vector<1x256xf32> to vector<1x128xf32>
    %16 = arith.addf %15, %5 : vector<1x128xf32>
    %17 = arith.negf %16 : vector<1x128xf32>
    %18 = math.exp %17 : vector<1x128xf32>
    %cst_9 = arith.constant 1.000000e+00 : f32
    %19 = vector.broadcast %cst_9 : f32 to vector<1x128xf32>
    %20 = arith.addf %19, %18 : vector<1x128xf32>
    %21 = arith.divf %19, %20 : vector<1x128xf32>
    %22 = vector.extract_strided_slice %21 {offsets = [0, 0], sizes = [1, 1], strides = [1, 1]} : vector<1x128xf32> to vector<1x1xf32>
    %cst_10 = arith.constant 5.000000e-01 : f32
    %23 = vector.broadcast %cst_10 : f32 to vector<1x1xf32>
    %24 = arith.cmpf oge, %22, %23 : vector<1x1xf32>
    %cst_11 = arith.constant 1.000000e+00 : f32
    %25 = vector.broadcast %cst_11 : f32 to vector<1x1xf32>
    %26 = arith.subf %25, %22 : vector<1x1xf32>
    %27 = arith.select %24, %22, %26 : vector<1x1xi1>, vector<1x1xf32>
    %28 = vector.extract_strided_slice %21 {offsets = [0, 2], sizes = [1, 1], strides = [1, 1]} : vector<1x128xf32> to vector<1x1xf32>
    %29 = vector.extract_strided_slice %21 {offsets = [0, 1], sizes = [1, 1], strides = [1, 1]} : vector<1x128xf32> to vector<1x1xf32>
    %30 = arith.select %24, %28, %29 : vector<1x1xi1>, vector<1x1xf32>
    %cst_12 = arith.constant 5.000000e-01 : f32
    %31 = vector.broadcast %cst_12 : f32 to vector<1x1xf32>
    %32 = arith.cmpf oge, %30, %31 : vector<1x1xf32>
    %cst_13 = arith.constant 1.000000e+00 : f32
    %33 = vector.broadcast %cst_13 : f32 to vector<1x1xf32>
    %34 = arith.subf %33, %30 : vector<1x1xf32>
    %35 = arith.select %32, %30, %34 : vector<1x1xi1>, vector<1x1xf32>
    %36 = vector.extract_strided_slice %21 {offsets = [0, 6], sizes = [1, 1], strides = [1, 1]} : vector<1x128xf32> to vector<1x1xf32>
    %37 = vector.extract_strided_slice %21 {offsets = [0, 5], sizes = [1, 1], strides = [1, 1]} : vector<1x128xf32> to vector<1x1xf32>
    %38 = arith.select %32, %36, %37 : vector<1x1xi1>, vector<1x1xf32>
    %39 = vector.extract_strided_slice %21 {offsets = [0, 4], sizes = [1, 1], strides = [1, 1]} : vector<1x128xf32> to vector<1x1xf32>
    %40 = vector.extract_strided_slice %21 {offsets = [0, 3], sizes = [1, 1], strides = [1, 1]} : vector<1x128xf32> to vector<1x1xf32>
    %41 = arith.select %32, %39, %40 : vector<1x1xi1>, vector<1x1xf32>
    %42 = arith.select %24, %38, %41 : vector<1x1xi1>, vector<1x1xf32>
    %cst_14 = arith.constant 5.000000e-01 : f32
    %43 = vector.broadcast %cst_14 : f32 to vector<1x1xf32>
    %44 = arith.cmpf oge, %42, %43 : vector<1x1xf32>
    %cst_15 = arith.constant 1.000000e+00 : f32
    %45 = vector.broadcast %cst_15 : f32 to vector<1x1xf32>
    %46 = arith.subf %45, %42 : vector<1x1xf32>
    %47 = arith.select %44, %42, %46 : vector<1x1xi1>, vector<1x1xf32>
    %48 = arith.extui %24 : vector<1x1xi1> to vector<1x1xi32>
    %c4_i32 = arith.constant 4 : i32
    %49 = vector.broadcast %c4_i32 : i32 to vector<1x1xi32>
    %50 = arith.muli %48, %49 : vector<1x1xi32>
    %51 = arith.extui %32 : vector<1x1xi1> to vector<1x1xi32>
    %c2_i32 = arith.constant 2 : i32
    %52 = vector.broadcast %c2_i32 : i32 to vector<1x1xi32>
    %53 = arith.muli %51, %52 : vector<1x1xi32>
    %54 = arith.addi %50, %53 : vector<1x1xi32>
    %55 = arith.extui %44 : vector<1x1xi1> to vector<1x1xi32>
    %56 = arith.addi %54, %55 : vector<1x1xi32>
    %c0_16 = arith.constant 0 : index
    %c0_17 = arith.constant 0 : index
    %57 = vector.load %arg2[%c0_16, %c0_17] : memref<16x128xf32, #tpu.memory_space<vmem>>, vector<8x128xf32>
    %58 = tpu.iota {dimensions = array<i32: 0>} : vector<8x128xi32>
    %59 = vector.broadcast %56 : vector<1x1xi32> to vector<8x128xi32>
    %60 = arith.cmpi eq, %58, %59 : vector<8x128xi32>
    %cst_18 = arith.constant 0.000000e+00 : f32
    %61 = vector.broadcast %cst_18 : f32 to vector<8x128xf32>
    %62 = arith.select %60, %57, %61 : vector<8x128xi1>, vector<8x128xf32>
    %cst_19 = arith.constant dense<0.000000e+00> : vector<128xf32>
    %63 = vector.multi_reduction <add>, %62, %cst_19 [0] : vector<8x128xf32> to vector<128xf32>
    %64 = vector.shape_cast %63 : vector<128xf32> to vector<1x128xf32>
    %65 = arith.mulf %27, %35 : vector<1x1xf32>
    %66 = arith.mulf %65, %47 : vector<1x1xf32>
    %67 = vector.broadcast %66 : vector<1x1xf32> to vector<1x128xf32>
    %68 = arith.mulf %67, %64 : vector<1x128xf32>
    %69 = tpu.iota {dimensions = array<i32: 1>} : vector<1x128xi32>
    %c8_i32 = arith.constant 8 : i32
    %70 = vector.broadcast %c8_i32 : i32 to vector<1x128xi32>
    %71 = arith.cmpi eq, %69, %70 : vector<1x128xi32>
    %72 = vector.shape_cast %14 : vector<1x1xf32> to vector<1x1xf32>
    %73 = vector.broadcast %72 : vector<1x1xf32> to vector<1x128xf32>
    %74 = arith.select %71, %73, %68 : vector<1x128xi1>, vector<1x128xf32>
    %c0_20 = arith.constant 0 : index
    %c0_21 = arith.constant 0 : index
    %75 = vector.load %arg3[%c0_20, %c0_21] : memref<1x128xf32, #tpu.memory_space<vmem>>, vector<1x128xf32>
    tpu.vector_store %arg3[%c0_20, %c0_21], %74 {strides = array<i32>} : memref<1x128xf32, #tpu.memory_space<vmem>>, vector<1x128xf32>,
    return
  }
}

</mosaic_0001>

<llo_original>
// kernel: tpu_custom_call.1
$region0: #{tpu_custom_call.1}
  #allocation0 [shape = 'u32[]', space=smem, size = 0x4, offset = 0x4, fixed_abs, tag = 'smem constant byte address 0x4 - core index']
  #allocation1 [shape = 'u32[144,128]{1,0:T(1,128)}', space=vmem, size = 0x12000, scoped, tag = 'internal scratch']
  %s0 = inlined_call_operand.hbm [shape: f32[1,32], index: 0, kind: input, shape index: {}]
  %s1 = inlined_call_operand.hbm [shape: f32[32,256], index: 1, kind: input, shape index: {}]
  %s2 = inlined_call_operand.hbm [shape: f32[16,128], index: 2, kind: input, shape index: {}]
  %s3 = inlined_call_operand.hbm [shape: f32[1,128], index: 3, kind: output, shape index: {}]
  %s4 = sld [smem:[#allocation0]]
  $region34: #{tpu_custom_call.1} parent=0
    _
  %s6 = ssub.s32 1, %s4
  %s7 = scalar_select 0, %s6, %s4
  $region1: #{tpu_custom_call.1} parent=0
    #allocation2 [shape = 'u8[512]{0}', space=vmem, size = 0x400, scoped, tag = 'input window, operand 0, single buffered']
    #allocation3 [shape = 's32[1]{0}', space=sflag, size = 0x4, scoped, tag = 'scoped memory for tpu_custom_call.1']
    #allocation4 [shape = 's32[1]{0}', space=sflag, size = 0x4, scoped, tag = 'scoped memory for tpu_custom_call.1']
    #allocation5 [shape = 'u8[32768]{0}', space=vmem, size = 0x8000, scoped, tag = 'input window, operand 1, single buffered']
    #allocation6 [shape = 's32[1]{0}', space=sflag, size = 0x4, scoped, tag = 'scoped memory for tpu_custom_call.1']
    #allocation7 [shape = 'u8[8192]{0}', space=vmem, size = 0x2000, scoped, tag = 'input window, operand 2, single buffered']
    #allocation8 [shape = 'u8[512]{0}', space=vmem, size = 0x400, scoped, tag = 'output window, operand 0, single buffered']
    %8 = vsyncpa [#allocation3], 0
    %9 = vsyncpa [#allocation6], 0
    %10 = vsyncpa [#allocation4], 0
    // Predicated region
    $region2: #{tpu_custom_call.1} parent=1 // pred_check
      _
    $region3: #{tpu_custom_call.1} parent=1 // pred_check_branch
      %12 = sbr.rel (0) target = $region5
    $region4: #{tpu_custom_call.1} parent=1 // pred_region
      %s14 = ssub.s32 16, 16
      %15 = vsyncadd [#allocation3], %s14
      %s17 = sshll.u32 [#allocation2], 4
      %s18 = int_to_ptr.vmem [resolvable:$true] %s17
      %20 = dma.hbm_to_vmem [thread:$0]  %s0, 16, %s18, [#allocation3]
    $region5: #{tpu_custom_call.1} parent=1 // pred_fallthru
      _
    // Predicated region
    $region6: #{tpu_custom_call.1} parent=1 // pred_check
      _
    $region7: #{tpu_custom_call.1} parent=1 // pred_check_branch
      %22 = sbr.rel (0) target = $region9
    $region8: #{tpu_custom_call.1} parent=1 // pred_region
      %s24 = ssub.s32 1024, 1024
      %25 = vsyncadd [#allocation6], %s24
      %s26 = sshll.u32 [#allocation5], 4
      %s27 = int_to_ptr.vmem [resolvable:$true] %s26
      %32 = dma.hbm_to_vmem [thread:$0]  %s1, 1024, %s27, [#allocation6], 256, 256, 16
    $region9: #{tpu_custom_call.1} parent=1 // pred_fallthru
      _
    // Predicated region
    $region10: #{tpu_custom_call.1} parent=1 // pred_check
      _
    $region11: #{tpu_custom_call.1} parent=1 // pred_check_branch
      %34 = sbr.rel (0) target = $region13
    $region12: #{tpu_custom_call.1} parent=1 // pred_region
      %s36 = ssub.s32 256, 256
      %37 = vsyncadd [#allocation6], %s36
      %s38 = sshll.u32 [#allocation7], 4
      %s39 = int_to_ptr.vmem [resolvable:$true] %s38
      %44 = dma.hbm_to_vmem [thread:$0]  %s2, 256, %s39, [#allocation6], 128, 128, 8
    $region13: #{tpu_custom_call.1} parent=1 // pred_fallthru
      _
    // Predicated region
    $region14: #{tpu_custom_call.1} parent=1 // pred_check
      _
    $region15: #{tpu_custom_call.1} parent=1 // pred_check_branch
      %46 = sbr.rel (0) target = $region17
    $region16: #{tpu_custom_call.1} parent=1 // pred_region
      %47 = dma.done [#allocation3], 16
    $region17: #{tpu_custom_call.1} parent=1 // pred_fallthru
      _
    // Predicated region
    $region18: #{tpu_custom_call.1} parent=1 // pred_check
      _
    $region19: #{tpu_custom_call.1} parent=1 // pred_check_branch
      %49 = sbr.rel (0) target = $region21
    $region20: #{tpu_custom_call.1} parent=1 // pred_region
      %50 = dma.done [#allocation6], 1024
    $region21: #{tpu_custom_call.1} parent=1 // pred_fallthru
      _
    // Predicated region
    $region22: #{tpu_custom_call.1} parent=1 // pred_check
      _
    $region23: #{tpu_custom_call.1} parent=1 // pred_check_branch
      %52 = sbr.rel (0) target = $region25
    $region24: #{tpu_custom_call.1} parent=1 // pred_region
      %53 = dma.done [#allocation6], 256
    $region25: #{tpu_custom_call.1} parent=1 // pred_fallthru
      _
    %v54 = vld [vmem:[#allocation2] sm:$0x1]
    %v55 = vld [vmem:[#allocation5] sm:$0xff]
    %v56 = vld [vmem:[#allocation5 + $0x8] sm:$0xff]
    %v57 = vld [vmem:[#allocation5 + $0x10] sm:$0xff]
    %v58 = vld [vmem:[#allocation5 + $0x18] sm:$0xff]
    %v59 = vld [vmem:[#allocation5 + $0x20] sm:$0xff]
    %v60 = vld [vmem:[#allocation5 + $0x28] sm:$0xff]
    %v61 = vld [vmem:[#allocation5 + $0x30] sm:$0xff]
    %v62 = vld [vmem:[#allocation5 + $0x38] sm:$0xff]
    %vm63 = vcmask 261120
    %v65 = vsel %vm63, %v54, 0
    %v67 = vand.u32 %v56, 4294901760
    %68 = vmatprep.subr.mxu0 %v67
    %v69 = vand.u32 %v55, 4294901760
    %70 = vmatpush1.msra.mxu0 %v69
    %v71 = vand.u32 %v58, 4294901760
    %72 = vmatprep.subr.mxu0 %v71
    %v73 = vand.u32 %v57, 4294901760
    %74 = vmatpush1.msra.mxu0 %v73
    %v75 = vand.u32 %v60, 4294901760
    %76 = vmatprep.subr.mxu0 %v75
    %v77 = vand.u32 %v59, 4294901760
    %78 = vmatpush1.msra.mxu0 %v77
    %v79 = vand.u32 %v62, 4294901760
    %80 = vmatprep.subr.mxu0 %v79
    %v81 = vand.u32 %v61, 4294901760
    %82 = vmatpush1.msra.mxu0 %v81
    %83 = vmatprep.subr.mxu0 0.0
    %84 = vmatpush1.msra.mxu0 0.0
    %85 = vmatprep.subr.mxu0 0.0
    %86 = vmatpush1.msra.mxu0 0.0
    %87 = vmatprep.subr.mxu0 0.0
    %88 = vmatpush1.msra.mxu0 0.0
    %89 = vmatprep.subr.mxu0 0.0
    %90 = vmatpush1.msra.mxu0 0.0
    %91 = vmatprep.subr.mxu0 0.0
    %92 = vmatpush1.msra.mxu0 0.0
    %93 = vmatprep.subr.mxu0 0.0
    %94 = vmatpush1.msra.mxu0 0.0
    %95 = vmatprep.subr.mxu0 0.0
    %96 = vmatpush1.msra.mxu0 0.0
    %97 = vmatprep.subr.mxu0 0.0
    %98 = vmatpush1.msra.mxu0 0.0
    %99 = vmatprep.subr.mxu0 0.0
    %100 = vmatpush1.msra.mxu0 0.0
    %101 = vmatprep.subr.mxu0 0.0
    %102 = vmatpush1.msra.mxu0 0.0
    %103 = vmatprep.subr.mxu0 0.0
    %104 = vmatpush1.msra.mxu0 0.0
    %105 = vmatprep.subr.mxu0 0.0
    %106 = vmatpush1.msra.mxu0 0.0
    %107 = vmatprep.subr.mxu0 0.0
    %108 = vmatpush1.msra.mxu0 0.0
    %109 = vmatprep.subr.mxu0 0.0
    %110 = vmatpush1.msra.mxu0 0.0
    %111 = vmatprep.subr.mxu0 0.0
    %112 = vmatpush1.msra.mxu0 0.0
    %113 = vmatprep.subr.mxu0 0.0
    %114 = vmatpush1.msra.mxu0 0.0
    %115 = vmatprep.subr.mxu0 0.0
    %116 = vmatpush1.msra.mxu0 0.0
    %117 = vmatprep.subr.mxu0 0.0
    %118 = vmatpush1.msra.mxu0 0.0
    %119 = vmatprep.subr.mxu0 0.0
    %120 = vmatpush1.msra.mxu0 0.0
    %121 = vmatprep.subr.mxu0 0.0
    %122 = vmatpush1.msra.mxu0 0.0
    %123 = vmatprep.subr.mxu0 0.0
    %124 = vmatpush1.msra.mxu0 0.0
    %125 = vmatprep.subr.mxu0 0.0
    %126 = vmatpush1.msra.mxu0 0.0
    %127 = vmatprep.subr.mxu0 0.0
    %128 = vmatpush1.msra.mxu0 0.0
    %129 = vmatprep.subr.mxu0 0.0
    %130 = vmatpush1.msra.mxu0 0.0
    %131 = vmatprep.subr.mxu0 0.0
    %132 = vmatpush1.msra.mxu0 0.0
    %133 = vmatprep.subr.mxu0 0.0
    %134 = vmatpush1.msra.mxu0 0.0
    %135 = vmatprep.subr.mxu0 0.0
    %136 = vmatpush1.msra.mxu0 0.0
    %137 = vmatprep.subr.mxu0 0.0
    %138 = vmatpush1.msra.mxu0 0.0
    %139 = vmatprep.mubr.f32.mxu0 0.0
    %v140 = vand.u32 %v65, 4294901760
    %v141 = vsub.f32 %v65, %v140
    %v142 = vand.u32 %v141, 4294901760
    %v143 = vsub.f32 %v141, %v142
    %v144 = vand.u32 %v143, 4294901760
    %145 = vmatmul.mubr.f32.gmra.mrb[0].mxu0 %v144
    %v146 = vpop.f32.mrb[0].mxu0
    %v147 = vadd.f32 0.0, %v146
    %v148 = vpop.f32.mrb[0].mxu0
    %v149 = vadd.f32 0.0, %v148
    %150 = vdwg.mxu0
    %v151 = vand.u32 %v56, 4294901760
    %v152 = vsub.f32 %v56, %v151
    %v153 = vand.u32 %v152, 4294901760
    %v154 = vsub.f32 %v152, %v153
    %v155 = vand.u32 %v154, 4294901760
    %156 = vmatprep.subr.mxu0 %v155
    %v157 = vand.u32 %v55, 4294901760
    %v158 = vsub.f32 %v55, %v157
    %v159 = vand.u32 %v158, 4294901760
    %v160 = vsub.f32 %v158, %v159
    %v161 = vand.u32 %v160, 4294901760
    %162 = vmatpush1.msra.mxu0 %v161
    %v163 = vand.u32 %v58, 4294901760
    %v164 = vsub.f32 %v58, %v163
    %v165 = vand.u32 %v164, 4294901760
    %v166 = vsub.f32 %v164, %v165
    %v167 = vand.u32 %v166, 4294901760
    %168 = vmatprep.subr.mxu0 %v167
    %v169 = vand.u32 %v57, 4294901760
    %v170 = vsub.f32 %v57, %v169
    %v171 = vand.u32 %v170, 4294901760
    %v172 = vsub.f32 %v170, %v171
    %v173 = vand.u32 %v172, 4294901760
    %174 = vmatpush1.msra.mxu0 %v173
    %v175 = vand.u32 %v60, 4294901760
    %v176 = vsub.f32 %v60, %v175
    %v177 = vand.u32 %v176, 4294901760
    %v178 = vsub.f32 %v176, %v177
    %v179 = vand.u32 %v178, 4294901760
    %180 = vmatprep.subr.mxu0 %v179
    %v181 = vand.u32 %v59, 4294901760
    %v182 = vsub.f32 %v59, %v181
    %v183 = vand.u32 %v182, 4294901760
    %v184 = vsub.f32 %v182, %v183
    %v185 = vand.u32 %v184, 4294901760
    %186 = vmatpush1.msra.mxu0 %v185
    %v187 = vand.u32 %v62, 4294901760
    %v188 = vsub.f32 %v62, %v187
    %v189 = vand.u32 %v188, 4294901760
    %v190 = vsub.f32 %v188, %v189
    %v191 = vand.u32 %v190, 4294901760
    %192 = vmatprep.subr.mxu0 %v191
    %v193 = vand.u32 %v61, 4294901760
    %v194 = vsub.f32 %v61, %v193
    %v195 = vand.u32 %v194, 4294901760
    %v196 = vsub.f32 %v194, %v195
    %v197 = vand.u32 %v196, 4294901760
    %198 = vmatpush1.msra.mxu0 %v197
    %199 = vmatprep.subr.mxu0 0.0
    %200 = vmatpush1.msra.mxu0 0.0
    %201 = vmatprep.subr.mxu0 0.0
    %202 = vmatpush1.msra.mxu0 0.0
    %203 = vmatprep.subr.mxu0 0.0
    %204 = vmatpush1.msra.mxu0 0.0
    %205 = vmatprep.subr.mxu0 0.0
    %206 = vmatpush1.msra.mxu0 0.0
    %207 = vmatprep.subr.mxu0 0.0
    %208 = vmatpush1.msra.mxu0 0.0
    %209 = vmatprep.subr.mxu0 0.0
    %210 = vmatpush1.msra.mxu0 0.0
    %211 = vmatprep.subr.mxu0 0.0
    %212 = vmatpush1.msra.mxu0 0.0
    %213 = vmatprep.subr.mxu0 0.0
    %214 = vmatpush1.msra.mxu0 0.0
    %215 = vmatprep.subr.mxu0 0.0
    %216 = vmatpush1.msra.mxu0 0.0
    %217 = vmatprep.subr.mxu0 0.0
    %218 = vmatpush1.msra.mxu0 0.0
    %219 = vmatprep.subr.mxu0 0.0
    %220 = vmatpush1.msra.mxu0 0.0
    %221 = vmatprep.subr.mxu0 0.0
    %222 = vmatpush1.msra.mxu0 0.0
    %223 = vmatprep.subr.mxu0 0.0
    %224 = vmatpush1.msra.mxu0 0.0
    %225 = vmatprep.subr.mxu0 0.0
    %226 = vmatpush1.msra.mxu0 0.0
    %227 = vmatprep.subr.mxu0 0.0
    %228 = vmatpush1.msra.mxu0 0.0
    %229 = vmatprep.subr.mxu0 0.0
    %230 = vmatpush1.msra.mxu0 0.0
    %231 = vmatprep.subr.mxu0 0.0
    %232 = vmatpush1.msra.mxu0 0.0
    %233 = vmatprep.subr.mxu0 0.0
    %234 = vmatpush1.msra.mxu0 0.0
    %235 = vmatprep.subr.mxu0 0.0
    %236 = vmatpush1.msra.mxu0 0.0
    %237 = vmatprep.subr.mxu0 0.0
    %238 = vmatpush1.msra.mxu0 0.0
    %239 = vmatprep.subr.mxu0 0.0
    %240 = vmatpush1.msra.mxu0 0.0
    %241 = vmatprep.subr.mxu0 0.0
    %242 = vmatpush1.msra.mxu0 0.0
    %243 = vmatprep.subr.mxu0 0.0
    %244 = vmatpush1.msra.mxu0 0.0
    %245 = vmatprep.subr.mxu0 0.0
    %246 = vmatpush1.msra.mxu0 0.0
    %247 = vmatprep.subr.mxu0 0.0
    %248 = vmatpush1.msra.mxu0 0.0
    %249 = vmatprep.subr.mxu0 0.0
    %250 = vmatpush1.msra.mxu0 0.0
    %251 = vmatprep.subr.mxu0 0.0
    %252 = vmatpush1.msra.mxu0 0.0
    %253 = vmatprep.subr.mxu0 0.0
    %254 = vmatpush1.msra.mxu0 0.0
    %255 = vmatprep.mubr.f32.mxu0 0.0
    %v256 = vand.u32 %v65, 4294901760
    %257 = vmatmul.mubr.f32.gmra.mrb[0].mxu0 %v256
    %v258 = vpop.f32.mrb[0].mxu0
    %v259 = vadd.f32 %v147, %v258
    %v260 = vpop.f32.mrb[0].mxu0
    %v261 = vadd.f32 %v149, %v260
    %262 = vdwg.mxu0
    %v263 = vand.u32 %v56, 4294901760
    %v264 = vsub.f32 %v56, %v263
    %265 = vmatprep.subr.mxu0 %v264
    %v266 = vand.u32 %v55, 4294901760
    %v267 = vsub.f32 %v55, %v266
    %268 = vmatpush1.msra.mxu0 %v267
    %v269 = vand.u32 %v58, 4294901760
    %v270 = vsub.f32 %v58, %v269
    %271 = vmatprep.subr.mxu0 %v270
    %v272 = vand.u32 %v57, 4294901760
    %v273 = vsub.f32 %v57, %v272
    %274 = vmatpush1.msra.mxu0 %v273
    %v275 = vand.u32 %v60, 4294901760
    %v276 = vsub.f32 %v60, %v275
    %277 = vmatprep.subr.mxu0 %v276
    %v278 = vand.u32 %v59, 4294901760
    %v279 = vsub.f32 %v59, %v278
    %280 = vmatpush1.msra.mxu0 %v279
    %v281 = vand.u32 %v62, 4294901760
    %v282 = vsub.f32 %v62, %v281
    %283 = vmatprep.subr.mxu0 %v282
    %v284 = vand.u32 %v61, 4294901760
    %v285 = vsub.f32 %v61, %v284
    %286 = vmatpush1.msra.mxu0 %v285
    %287 = vmatprep.subr.mxu0 0.0
    %288 = vmatpush1.msra.mxu0 0.0
    %289 = vmatprep.subr.mxu0 0.0
    %290 = vmatpush1.msra.mxu0 0.0
    %291 = vmatprep.subr.mxu0 0.0
    %292 = vmatpush1.msra.mxu0 0.0
    %293 = vmatprep.subr.mxu0 0.0
    %294 = vmatpush1.msra.mxu0 0.0
    %295 = vmatprep.subr.mxu0 0.0
    %296 = vmatpush1.msra.mxu0 0.0
    %297 = vmatprep.subr.mxu0 0.0
    %298 = vmatpush1.msra.mxu0 0.0
    %299 = vmatprep.subr.mxu0 0.0
    %300 = vmatpush1.msra.mxu0 0.0
    %301 = vmatprep.subr.mxu0 0.0
    %302 = vmatpush1.msra.mxu0 0.0
    %303 = vmatprep.subr.mxu0 0.0
    %304 = vmatpush1.msra.mxu0 0.0
    %305 = vmatprep.subr.mxu0 0.0
    %306 = vmatpush1.msra.mxu0 0.0
    %307 = vmatprep.subr.mxu0 0.0
    %308 = vmatpush1.msra.mxu0 0.0
    %309 = vmatprep.subr.mxu0 0.0
    %310 = vmatpush1.msra.mxu0 0.0
    %311 = vmatprep.subr.mxu0 0.0
    %312 = vmatpush1.msra.mxu0 0.0
    %313 = vmatprep.subr.mxu0 0.0
    %314 = vmatpush1.msra.mxu0 0.0
    %315 = vmatprep.subr.mxu0 0.0
    %316 = vmatpush1.msra.mxu0 0.0
    %317 = vmatprep.subr.mxu0 0.0
    %318 = vmatpush1.msra.mxu0 0.0
    %319 = vmatprep.subr.mxu0 0.0
    %320 = vmatpush1.msra.mxu0 0.0
    %321 = vmatprep.subr.mxu0 0.0
    %322 = vmatpush1.msra.mxu0 0.0
    %323 = vmatprep.subr.mxu0 0.0
    %324 = vmatpush1.msra.mxu0 0.0
    %325 = vmatprep.subr.mxu0 0.0
    %326 = vmatpush1.msra.mxu0 0.0
    %327 = vmatprep.subr.mxu0 0.0
    %328 = vmatpush1.msra.mxu0 0.0
    %329 = vmatprep.subr.mxu0 0.0
    %330 = vmatpush1.msra.mxu0 0.0
    %331 = vmatprep.subr.mxu0 0.0
    %332 = vmatpush1.msra.mxu0 0.0
    %333 = vmatprep.subr.mxu0 0.0
    %334 = vmatpush1.msra.mxu0 0.0
    %335 = vmatprep.subr.mxu0 0.0
    %336 = vmatpush1.msra.mxu0 0.0
    %337 = vmatprep.subr.mxu0 0.0
    %338 = vmatpush1.msra.mxu0 0.0
    %339 = vmatprep.subr.mxu0 0.0
    %340 = vmatpush1.msra.mxu0 0.0
    %341 = vmatprep.subr.mxu0 0.0
    %342 = vmatpush1.msra.mxu0 0.0
    %343 = vmatprep.mubr.f32.mxu0 0.0
    %v344 = vand.u32 %v65, 4294901760
    %v345 = vsub.f32 %v65, %v344
    %346 = vmatmul.mubr.f32.gmra.mrb[0].mxu0 %v345
    %v347 = vpop.f32.mrb[0].mxu0
    %v348 = vadd.f32 %v259, %v347
    %v349 = vpop.f32.mrb[0].mxu0
    %v350 = vadd.f32 %v261, %v349
    %351 = vdwg.mxu0
    %v352 = vand.u32 %v56, 4294901760
    %353 = vmatprep.subr.mxu0 %v352
    %v354 = vand.u32 %v55, 4294901760
    %355 = vmatpush1.msra.mxu0 %v354
    %v356 = vand.u32 %v58, 4294901760
    %357 = vmatprep.subr.mxu0 %v356
    %v358 = vand.u32 %v57, 4294901760
    %359 = vmatpush1.msra.mxu0 %v358
    %v360 = vand.u32 %v60, 4294901760
    %361 = vmatprep.subr.mxu0 %v360
    %v362 = vand.u32 %v59, 4294901760
    %363 = vmatpush1.msra.mxu0 %v362
    %v364 = vand.u32 %v62, 4294901760
    %365 = vmatprep.subr.mxu0 %v364
    %v366 = vand.u32 %v61, 4294901760
    %367 = vmatpush1.msra.mxu0 %v366
    %368 = vmatprep.subr.mxu0 0.0
    %369 = vmatpush1.msra.mxu0 0.0
    %370 = vmatprep.subr.mxu0 0.0
    %371 = vmatpush1.msra.mxu0 0.0
    %372 = vmatprep.subr.mxu0 0.0
    %373 = vmatpush1.msra.mxu0 0.0
    %374 = vmatprep.subr.mxu0 0.0
    %375 = vmatpush1.msra.mxu0 0.0
    %376 = vmatprep.subr.mxu0 0.0
    %377 = vmatpush1.msra.mxu0 0.0
    %378 = vmatprep.subr.mxu0 0.0
    %379 = vmatpush1.msra.mxu0 0.0
    %380 = vmatprep.subr.mxu0 0.0
    %381 = vmatpush1.msra.mxu0 0.0
    %382 = vmatprep.subr.mxu0 0.0
    %383 = vmatpush1.msra.mxu0 0.0
    %384 = vmatprep.subr.mxu0 0.0
    %385 = vmatpush1.msra.mxu0 0.0
    %386 = vmatprep.subr.mxu0 0.0
    %387 = vmatpush1.msra.mxu0 0.0
    %388 = vmatprep.subr.mxu0 0.0
    %389 = vmatpush1.msra.mxu0 0.0
    %390 = vmatprep.subr.mxu0 0.0
    %391 = vmatpush1.msra.mxu0 0.0
    %392 = vmatprep.subr.mxu0 0.0
    %393 = vmatpush1.msra.mxu0 0.0
    %394 = vmatprep.subr.mxu0 0.0
    %395 = vmatpush1.msra.mxu0 0.0
    %396 = vmatprep.subr.mxu0 0.0
    %397 = vmatpush1.msra.mxu0 0.0
    %398 = vmatprep.subr.mxu0 0.0
    %399 = vmatpush1.msra.mxu0 0.0
    %400 = vmatprep.subr.mxu0 0.0
    %401 = vmatpush1.msra.mxu0 0.0
    %402 = vmatprep.subr.mxu0 0.0
    %403 = vmatpush1.msra.mxu0 0.0
    %404 = vmatprep.subr.mxu0 0.0
    %405 = vmatpush1.msra.mxu0 0.0
    %406 = vmatprep.subr.mxu0 0.0
    %407 = vmatpush1.msra.mxu0 0.0
    %408 = vmatprep.subr.mxu0 0.0
    %409 = vmatpush1.msra.mxu0 0.0
    %410 = vmatprep.subr.mxu0 0.0
    %411 = vmatpush1.msra.mxu0 0.0
    %412 = vmatprep.subr.mxu0 0.0
    %413 = vmatpush1.msra.mxu0 0.0
    %414 = vmatprep.subr.mxu0 0.0
    %415 = vmatpush1.msra.mxu0 0.0
    %416 = vmatprep.subr.mxu0 0.0
    %417 = vmatpush1.msra.mxu0 0.0
    %418 = vmatprep.subr.mxu0 0.0
    %419 = vmatpush1.msra.mxu0 0.0
    %420 = vmatprep.subr.mxu0 0.0
    %421 = vmatpush1.msra.mxu0 0.0
    %422 = vmatprep.subr.mxu0 0.0
    %423 = vmatpush1.msra.mxu0 0.0
    %424 = vmatprep.mubr.f32.mxu0 0.0
    %v425 = vand.u32 %v65, 4294901760
    %v426 = vsub.f32 %v65, %v425
    %v427 = vand.u32 %v426, 4294901760
    %428 = vmatmul.mubr.f32.gmra.mrb[0].mxu0 %v427
    %v429 = vpop.f32.mrb[0].mxu0
    %v430 = vadd.f32 %v348, %v429
    %v431 = vpop.f32.mrb[0].mxu0
    %v432 = vadd.f32 %v350, %v431
    %433 = vdwg.mxu0
    %v434 = vand.u32 %v56, 4294901760
    %v435 = vsub.f32 %v56, %v434
    %v436 = vand.u32 %v435, 4294901760
    %437 = vmatprep.subr.mxu0 %v436
    %v438 = vand.u32 %v55, 4294901760
    %v439 = vsub.f32 %v55, %v438
    %v440 = vand.u32 %v439, 4294901760
    %441 = vmatpush1.msra.mxu0 %v440
    %v442 = vand.u32 %v58, 4294901760
    %v443 = vsub.f32 %v58, %v442
    %v444 = vand.u32 %v443, 4294901760
    %445 = vmatprep.subr.mxu0 %v444
    %v446 = vand.u32 %v57, 4294901760
    %v447 = vsub.f32 %v57, %v446
    %v448 = vand.u32 %v447, 4294901760
    %449 = vmatpush1.msra.mxu0 %v448
    %v450 = vand.u32 %v60, 4294901760
    %v451 = vsub.f32 %v60, %v450
    %v452 = vand.u32 %v451, 4294901760
    %453 = vmatprep.subr.mxu0 %v452
    %v454 = vand.u32 %v59, 4294901760
    %v455 = vsub.f32 %v59, %v454
    %v456 = vand.u32 %v455, 4294901760
    %457 = vmatpush1.msra.mxu0 %v456
    %v458 = vand.u32 %v62, 4294901760
    %v459 = vsub.f32 %v62, %v458
    %v460 = vand.u32 %v459, 4294901760
    %461 = vmatprep.subr.mxu0 %v460
    %v462 = vand.u32 %v61, 4294901760
    %v463 = vsub.f32 %v61, %v462
    %v464 = vand.u32 %v463, 4294901760
    %465 = vmatpush1.msra.mxu0 %v464
    %466 = vmatprep.subr.mxu0 0.0
    %467 = vmatpush1.msra.mxu0 0.0
    %468 = vmatprep.subr.mxu0 0.0
    %469 = vmatpush1.msra.mxu0 0.0
    %470 = vmatprep.subr.mxu0 0.0
    %471 = vmatpush1.msra.mxu0 0.0
    %472 = vmatprep.subr.mxu0 0.0
    %473 = vmatpush1.msra.mxu0 0.0
    %474 = vmatprep.subr.mxu0 0.0
    %475 = vmatpush1.msra.mxu0 0.0
    %476 = vmatprep.subr.mxu0 0.0
    %477 = vmatpush1.msra.mxu0 0.0
    %478 = vmatprep.subr.mxu0 0.0
    %479 = vmatpush1.msra.mxu0 0.0
    %480 = vmatprep.subr.mxu0 0.0
    %481 = vmatpush1.msra.mxu0 0.0
    %482 = vmatprep.subr.mxu0 0.0
    %483 = vmatpush1.msra.mxu0 0.0
    %484 = vmatprep.subr.mxu0 0.0
    %485 = vmatpush1.msra.mxu0 0.0
    %486 = vmatprep.subr.mxu0 0.0
    %487 = vmatpush1.msra.mxu0 0.0
    %488 = vmatprep.subr.mxu0 0.0
    %489 = vmatpush1.msra.mxu0 0.0
    %490 = vmatprep.subr.mxu0 0.0
    %491 = vmatpush1.msra.mxu0 0.0
    %492 = vmatprep.subr.mxu0 0.0
    %493 = vmatpush1.msra.mxu0 0.0
    %494 = vmatprep.subr.mxu0 0.0
    %495 = vmatpush1.msra.mxu0 0.0
    %496 = vmatprep.subr.mxu0 0.0
    %497 = vmatpush1.msra.mxu0 0.0
    %498 = vmatprep.subr.mxu0 0.0
    %499 = vmatpush1.msra.mxu0 0.0
    %500 = vmatprep.subr.mxu0 0.0
    %501 = vmatpush1.msra.mxu0 0.0
    %502 = vmatprep.subr.mxu0 0.0
    %503 = vmatpush1.msra.mxu0 0.0
    %504 = vmatprep.subr.mxu0 0.0
    %505 = vmatpush1.msra.mxu0 0.0
    %506 = vmatprep.subr.mxu0 0.0
    %507 = vmatpush1.msra.mxu0 0.0
    %508 = vmatprep.subr.mxu0 0.0
    %509 = vmatpush1.msra.mxu0 0.0
    %510 = vmatprep.subr.mxu0 0.0
    %511 = vmatpush1.msra.mxu0 0.0
    %512 = vmatprep.subr.mxu0 0.0
    %513 = vmatpush1.msra.mxu0 0.0
    %514 = vmatprep.subr.mxu0 0.0
    %515 = vmatpush1.msra.mxu0 0.0
    %516 = vmatprep.subr.mxu0 0.0
    %517 = vmatpush1.msra.mxu0 0.0
    %518 = vmatprep.subr.mxu0 0.0
    %519 = vmatpush1.msra.mxu0 0.0
    %520 = vmatprep.subr.mxu0 0.0
    %521 = vmatpush1.msra.mxu0 0.0
    %522 = vmatprep.mubr.f32.mxu0 0.0
    %v523 = vand.u32 %v65, 4294901760
    %524 = vmatmul.mubr.f32.gmra.mrb[0].mxu0 %v523
    %v525 = vpop.f32.mrb[0].mxu0
    %v526 = vadd.f32 %v430, %v525
    %v527 = vpop.f32.mrb[0].mxu0
    %v528 = vadd.f32 %v432, %v527
    %529 = vdwg.mxu0
    %v530 = vand.u32 %v56, 4294901760
    %531 = vmatprep.subr.mxu0 %v530
    %v532 = vand.u32 %v55, 4294901760
    %533 = vmatpush1.msra.mxu0 %v532
    %v534 = vand.u32 %v58, 4294901760
    %535 = vmatprep.subr.mxu0 %v534
    %v536 = vand.u32 %v57, 4294901760
    %537 = vmatpush1.msra.mxu0 %v536
    %v538 = vand.u32 %v60, 4294901760
    %539 = vmatprep.subr.mxu0 %v538
    %v540 = vand.u32 %v59, 4294901760
    %541 = vmatpush1.msra.mxu0 %v540
    %v542 = vand.u32 %v62, 4294901760
    %543 = vmatprep.subr.mxu0 %v542
    %v544 = vand.u32 %v61, 4294901760
    %545 = vmatpush1.msra.mxu0 %v544
    %546 = vmatprep.subr.mxu0 0.0
    %547 = vmatpush1.msra.mxu0 0.0
    %548 = vmatprep.subr.mxu0 0.0
    %549 = vmatpush1.msra.mxu0 0.0
    %550 = vmatprep.subr.mxu0 0.0
    %551 = vmatpush1.msra.mxu0 0.0
    %552 = vmatprep.subr.mxu0 0.0
    %553 = vmatpush1.msra.mxu0 0.0
    %554 = vmatprep.subr.mxu0 0.0
    %555 = vmatpush1.msra.mxu0 0.0
    %556 = vmatprep.subr.mxu0 0.0
    %557 = vmatpush1.msra.mxu0 0.0
    %558 = vmatprep.subr.mxu0 0.0
    %559 = vmatpush1.msra.mxu0 0.0
    %560 = vmatprep.subr.mxu0 0.0
    %561 = vmatpush1.msra.mxu0 0.0
    %562 = vmatprep.subr.mxu0 0.0
    %563 = vmatpush1.msra.mxu0 0.0
    %564 = vmatprep.subr.mxu0 0.0
    %565 = vmatpush1.msra.mxu0 0.0
    %566 = vmatprep.subr.mxu0 0.0
    %567 = vmatpush1.msra.mxu0 0.0
    %568 = vmatprep.subr.mxu0 0.0
    %569 = vmatpush1.msra.mxu0 0.0
    %570 = vmatprep.subr.mxu0 0.0
    %571 = vmatpush1.msra.mxu0 0.0
    %572 = vmatprep.subr.mxu0 0.0
    %573 = vmatpush1.msra.mxu0 0.0
    %574 = vmatprep.subr.mxu0 0.0
    %575 = vmatpush1.msra.mxu0 0.0
    %576 = vmatprep.subr.mxu0 0.0
    %577 = vmatpush1.msra.mxu0 0.0
    %578 = vmatprep.subr.mxu0 0.0
    %579 = vmatpush1.msra.mxu0 0.0
    %580 = vmatprep.subr.mxu0 0.0
    %581 = vmatpush1.msra.mxu0 0.0
    %582 = vmatprep.subr.mxu0 0.0
    %583 = vmatpush1.msra.mxu0 0.0
    %584 = vmatprep.subr.mxu0 0.0
    %585 = vmatpush1.msra.mxu0 0.0
    %586 = vmatprep.subr.mxu0 0.0
    %587 = vmatpush1.msra.mxu0 0.0
    %588 = vmatprep.subr.mxu0 0.0
    %589 = vmatpush1.msra.mxu0 0.0
    %590 = vmatprep.subr.mxu0 0.0
    %591 = vmatpush1.msra.mxu0 0.0
    %592 = vmatprep.subr.mxu0 0.0
    %593 = vmatpush1.msra.mxu0 0.0
    %594 = vmatprep.subr.mxu0 0.0
    %595 = vmatpush1.msra.mxu0 0.0
    %596 = vmatprep.subr.mxu0 0.0
    %597 = vmatpush1.msra.mxu0 0.0
    %598 = vmatprep.subr.mxu0 0.0
    %599 = vmatpush1.msra.mxu0 0.0
    %600 = vmatprep.subr.mxu0 0.0
    %601 = vmatpush1.msra.mxu0 0.0
    %602 = vmatprep.mubr.f32.mxu0 0.0
    %v603 = vand.u32 %v65, 4294901760
    %604 = vmatmul.mubr.f32.gmra.mrb[0].mxu0 %v603
    %v605 = vpop.f32.mrb[0].mxu0
    %v606 = vadd.f32 %v526, %v605
    %v607 = vpop.f32.mrb[0].mxu0
    %v608 = vadd.f32 %v528, %v607
    %609 = vdwg.mxu0
    %v610 = vld [vmem:[#allocation7 + $0x8] sm:$0x1]
    %v611 = vld [vmem:[#allocation7 + $0x9] sm:$0x1]
    %v612 = vld [vmem:[#allocation7 + $0xa] sm:$0x1]
    %v613 = vld [vmem:[#allocation7 + $0xb] sm:$0x1]
    %v614 = vadd.f32 %v606, %v610
    %v615 = vmax.f32 %v614, 0.0
    %v616 = vmul.f32 %v615, %v611
    %vm617 = vcmask 1040384
    %v618 = vsel %vm617, %v616, 0.0
    %619 = vadd.xlane.f32.xlu0 %v618
    %v620 = vpop.xlane.xlu0 %619
    %v621 = vadd.f32 %v620, %v613
    %v622 = vadd.f32 %v608, %v612
    %v623 = vxor.u32 %v622, 2147483648
    %v624 = vmul.f32 %v623, 1.442695
    %v625 = vpow.pop %v624
    %v626 = vadd.f32 %v625, 1.0
    %v627 = vrcp.pop %v626
    %v628 = vmul.f32 1.0, %v627
    %vm629 = vcmp.ge.f32.partialorder %v628, 0.5
    %v630 = vsub.f32 1.0, %v628
    %v631 = vsel %vm629, %v628, %v630
    %633 = vrot.lane.b32.xlu0 %v628, 126
    %v634 = vpop.permute.xlu0 %633
    %636 = vrot.lane.b32.xlu0 %v628, 127
    %v637 = vpop.permute.xlu0 %636
    %v639 = vsel %vm629, %v634, %v637
    %vm640 = vcmp.ge.f32.partialorder %v639, 0.5
    %v641 = vsub.f32 1.0, %v639
    %v642 = vsel %vm640, %v639, %v641
    %643 = vrot.lane.b32.xlu0 %v628, 122
    %v644 = vpop.permute.xlu0 %643
    %646 = vrot.lane.b32.xlu0 %v628, 123
    %v647 = vpop.permute.xlu0 %646
    %v649 = vsel %vm640, %v644, %v647
    %650 = vrot.lane.b32.xlu0 %v628, 124
    %v651 = vpop.permute.xlu0 %650
    %653 = vrot.lane.b32.xlu0 %v628, 125
    %v654 = vpop.permute.xlu0 %653
    %v656 = vsel %vm640, %v651, %v654
    %v657 = vsel %vm629, %v649, %v656
    %vm658 = vcmp.ge.f32.partialorder %v657, 0.5
    %v659 = vsub.f32 1.0, %v657
    %v660 = vsel %vm658, %v657, %v659
    %v661 = vsel %vm629, 1, 0
    %v662 = vmul.u32 %v661, 4
    %v663 = vsel %vm640, 1, 0
    %v664 = vmul.u32 %v663, 2
    %v665 = vadd.s32 %v662, %v664
    %v666 = vsel %vm658, 1, 0
    %v667 = vadd.s32 %v665, %v666
    %v668 = vld [vmem:[#allocation7] sm:$0xff]
    %v669 = vlaneseq
    %v670 = vshrl.u32 %v669, 7
    %s671 = vtos %v667
    %v672 = vstv %s671
    %vm673 = vcmp.eq.s32.totalorder %v670, %v672
    %v674 = vsel %vm673, %v668, 0.0
    %v675 = vrot.slane %v674, 4
    %v676 = vadd.f32 %v674, %v675
    %v677 = vrot.slane %v676, 2
    %v678 = vadd.f32 %v676, %v677
    %v679 = vrot.slane %v678, 1
    %v680 = vadd.f32 %v678, %v679
    %v681 = vmul.f32 %v631, %v642
    %v682 = vmul.f32 %v681, %v660
    %684 = vset.pattern.permute.xlu0 0
    %685 = vperm.xlu0 %684, %v682
    %v686 = vpop.permute.xlu0 %685
    %v688 = vmul.f32 %v686, %v680
    %v689 = vlaneseq
    %v690 = vand.u32 %v689, 127
    %vm691 = vcmp.eq.s32.totalorder %v690, 8
    %693 = vset.pattern.permute.xlu0 0
    %694 = vperm.xlu0 %693, %v621
    %v695 = vpop.permute.xlu0 %694
    %v697 = vsel %vm691, %v695, %v688
    %698 = vst [vmem:[#allocation8] sm:$0x1] %v697
    // Predicated region
    $region26: #{tpu_custom_call.1} parent=1 // pred_check
      _
    $region27: #{tpu_custom_call.1} parent=1 // pred_check_branch
      %700 = sbr.rel (0) target = $region29
    $region28: #{tpu_custom_call.1} parent=1 // pred_region
      %s702 = ssub.s32 16, 16
      %703 = vsyncadd [#allocation4], %s702
      %s705 = sshll.u32 [#allocation8], 4
      %s706 = int_to_ptr.vmem [resolvable:$true] %s705
      %708 = dma.vmem_to_hbm [thread:$0]  %s706, 16, %s3, [#allocation4]
    $region29: #{tpu_custom_call.1} parent=1 // pred_fallthru
      _
    // Predicated region
    $region30: #{tpu_custom_call.1} parent=1 // pred_check
      _
    $region31: #{tpu_custom_call.1} parent=1 // pred_check_branch
      %710 = sbr.rel (0) target = $region33
    $region32: #{tpu_custom_call.1} parent=1 // pred_region
      %711 = dma.done [#allocation4], 16
    $region33: #{tpu_custom_call.1} parent=1 // pred_fallthru
      _
    %712 = vsyncpa [#allocation3], 1
    %713 = vsyncpa [#allocation6], 1
    %714 = vsyncpa [#allocation4], 1

</llo_original>
